<compile_context>
chip_gen: v6e
topology: v6e:2x2x1
jax: 0.10.0
libtpu: 0.0.40
codegen_flags: <defaults>
</compile_context>

<pallas_src>
import functools

import jax
import jax.numpy as jnp
from jax import lax
from jax.experimental import pallas as pl
from jax.experimental.pallas import tpu as pltpu

_EPS = 1e-5          # nn.GroupNorm default eps
_LANE = 128
_MIB = 1024 * 1024


# ---------------------------------------------------------------------------
# Hardware-aware sizing helpers.
# ---------------------------------------------------------------------------
def _vmem_cap_bytes():
    """Physical VMEM per TensorCore; conservative default if the query fails."""
    try:
        info = pltpu.get_tpu_info()
        for name in ("vmem_capacity_bytes", "vmem_bytes", "vmem_size_bytes"):
            cap = getattr(info, name, None)
            if cap:
                return int(cap)
    except Exception:
        pass
    return 64 * _MIB          # v7x has the least VMEM (64 MiB per TensorCore)


def _vmem_ceiling_bytes():
    # Leave ~40% headroom for Mosaic internal scratch / in-kernel temporaries;
    # never request more than 96 MiB even on 128 MiB parts (v5e/v6e).
    return min(int(_vmem_cap_bytes() * 0.6), 96 * _MIB)


def _default_block_budget_bytes():
    # 2x double-buffered input blocks + 2x output blocks + ~2 block-sized f32
    # temporaries must fit under the ceiling with headroom for resident params.
    ceiling = _vmem_ceiling_bytes()
    return max(1 * _MIB, min(8 * _MIB, (ceiling - 4 * _MIB) // 8))


def _vmem_limit_bytes(buffered_blocks, temporaries, resident):
    """Scoped-VMEM request sized from the actual (double-buffered) blocks."""
    need = 2 * sum(buffered_blocks) + sum(temporaries) + resident + 2 * _MIB
    ceiling = _vmem_ceiling_bytes()
    limit = int(max(16 * _MIB, min(ceiling, need + need // 4)))
    return limit, need <= ceiling


def _choose_batch_tile(n, per_sample_bytes, max_block_bytes, tb_cap=None):
    """Largest batch tile TB dividing n with TB * per_sample <= budget.

    Prefers an even number of grid steps (>= 2) along the batch axis so that
    v7x's two TensorCores stay balanced; then >= 2 steps; then simply the
    largest fitting tile (amortizes the ~0.35 us per-step overhead).
    """
    cap = max(1, max_block_bytes // max(per_sample_bytes, 1))
    if tb_cap is not None:
        cap = min(cap, tb_cap)
    cap = min(cap, n)
    divisors = [d for d in range(1, cap + 1) if n % d == 0]
    for pred in (lambda d: (n // d) >= 2 and (n // d) % 2 == 0,
                 lambda d: (n // d) >= 2,
                 lambda d: True):
        cands = [d for d in divisors if pred(d)]
        if cands:
            return max(cands)
    return 1


# ---------------------------------------------------------------------------
# Kernels.
# ---------------------------------------------------------------------------
def _gn_fast_kernel(x_ref, g_ref, b_ref, o_ref, *, inv_count, eps, epilogue):
    """Whole-sample block: exact two-pass GroupNorm(1) + affine (+ epilogue).

    x_ref: (TB, C', S', 128) covering TB complete samples.
    g_ref/b_ref: (C', 128) lane-broadcast affine, VMEM resident.
    """
    # Re-index x_ref per use instead of holding one big f32 copy alive
    # (halves peak scratch for bf16 inputs; VMEM re-loads are cheap).
    mean = jnp.sum(x_ref[...].astype(jnp.float32), axis=(1, 2, 3),
                   keepdims=True) * inv_count
    d = x_ref[...].astype(jnp.float32) - mean
    var = jnp.sum(d * d, axis=(1, 2, 3), keepdims=True) * inv_count
    rstd = lax.rsqrt(var + eps)
    y = ((x_ref[...].astype(jnp.float32) - mean) * rstd
         * g_ref[...][None, :, None, :] + b_ref[...][None, :, None, :])
    if epilogue is not None:                 # fused purely-elementwise fn
        y = epilogue(y)
    o_ref[...] = y.astype(o_ref.dtype)


def _gn_stats_kernel(x_ref, stat_ref, *, tb):
    """Pass 1 (tiled path): accumulate per-sample lane-wise sum / sum-of-sq.

    x_ref: (TB, TC, S', 128) channel slice of TB samples.
    stat_ref: (8, 256) resident accumulator across the channel grid axis;
    rows 0:TB used, lanes 0:128 = sum partials, 128:256 = sum-of-squares.
    """
    c = pl.program_id(1)

    @pl.when(c == 0)
    def _():
        stat_ref[...] = jnp.zeros_like(stat_ref)

    ps = jnp.sum(x_ref[...].astype(jnp.float32), axis=(1, 2))            # (TB,128)
    pss = jnp.sum(jnp.square(x_ref[...].astype(jnp.float32)), axis=(1, 2))
    stat_ref[0:tb, 0:_LANE] += ps
    stat_ref[0:tb, _LANE:2 * _LANE] += pss


def _gn_norm_kernel(x_ref, g_ref, b_ref, mean_ref, rstd_ref, o_ref, *,
                    tb, tc, epilogue):
    """Pass 2 (tiled path): normalize + affine (+ fused elementwise epilogue).

    x_ref/o_ref: (TB, TC, S', 128); g_ref/b_ref: full (C', 128) resident;
    mean_ref/rstd_ref: (8, 128) per-sample stats (rows 0:TB, lane-broadcast).
    """
    coff = pl.multiple_of(pl.program_id(1) * tc, tc)
    g = g_ref[pl.ds(coff, tc), :][None, :, None, :]
    b = b_ref[pl.ds(coff, tc), :][None, :, None, :]
    mean = mean_ref[0:tb, :][:, None, None, :]
    rstd = rstd_ref[0:tb, :][:, None, None, :]
    y = (x_ref[...].astype(jnp.float32) - mean) * rstd * g + b
    if epilogue is not None:
        y = epilogue(y)
    o_ref[...] = y.astype(o_ref.dtype)


# ---------------------------------------------------------------------------
# Reference / fallback.
# ---------------------------------------------------------------------------
def _groupnorm1_ref(x, gamma, beta):
    N, C, H, W = x.shape
    xf = x.reshape(N, -1).astype(jnp.float32)
    mean = xf.mean(axis=1, keepdims=True)
    var = ((xf - mean) ** 2).mean(axis=1, keepdims=True)
    xn = ((xf - mean) / jnp.sqrt(var + _EPS)).reshape(N, C, H, W)
    return (xn * gamma.astype(jnp.float32)[None, :, None, None]
            + beta.astype(jnp.float32)[None, :, None, None]).astype(x.dtype)


# ---------------------------------------------------------------------------
# Wrapper.
# ---------------------------------------------------------------------------
def groupnorm1_pallas(x_nchw, gamma, beta, elementwise_fn=None, *,
                      max_block_bytes=None):
    """GroupNorm(num_groups=1, C) over NCHW input via Pallas TPU kernels.

    `elementwise_fn`, if given, MUST be purely elementwise (it is fused into
    the kernel epilogue per output block).  `max_block_bytes` overrides the
    per-buffer block budget (mainly to exercise the tiled path in tests).
    """
    N, C, H, W = x_nchw.shape
    count = C * H * W
    itemsize = jnp.dtype(x_nchw.dtype).itemsize
    if max_block_bytes is None:
        max_block_bytes = _default_block_budget_bytes()

    # ---- choose a lane-dense layout -------------------------------------
    if (H * W) % _LANE == 0:
        # Per-channel rows -> affine params stay tiny (C, 128).
        Cp, Sp = C, (H * W) // _LANE
        gamma2d = jnp.broadcast_to(gamma.astype(jnp.float32)[:, None], (Cp, _LANE))
        beta2d = jnp.broadcast_to(beta.astype(jnp.float32)[:, None], (Cp, _LANE))
        allow_tiled = True
    elif count % _LANE == 0:
        # Awkward spatial size: flatten each sample to (R, 128) rows and
        # pre-broadcast the affine to the same slab (fast path only).
        Cp, Sp = count // _LANE, 1
        gamma2d = jnp.broadcast_to(
            gamma.astype(jnp.float32)[:, None], (C, H * W)).reshape(Cp, _LANE)
        beta2d = jnp.broadcast_to(
            beta.astype(jnp.float32)[:, None], (C, H * W)).reshape(Cp, _LANE)
        allow_tiled = False
    else:
        # TODO(synk): lane-padded Pallas path for C*H*W not divisible by 128.
        y = _groupnorm1_ref(x_nchw, gamma, beta)
        return elementwise_fn(y) if elementwise_fn is not None else y

    x4 = x_nchw.reshape(N, Cp, Sp, _LANE)
    per_sample_bytes = Cp * Sp * _LANE * itemsize
    affine_bytes = 2 * Cp * _LANE * 4
    inv_count = 1.0 / float(count)

    # ---------------- fast path: whole samples per block ------------------
    if per_sample_bytes <= max_block_bytes:
        TB = _choose_batch_tile(N, per_sample_bytes, max_block_bytes)
        block_bytes = TB * per_sample_bytes
        block_f32 = TB * Cp * Sp * _LANE * 4
        vmem_limit, fits = _vmem_limit_bytes(
            buffered_blocks=[block_bytes, block_bytes],
            temporaries=[2 * block_f32],
            resident=affine_bytes)
        if fits:
            kernel = functools.partial(_gn_fast_kernel, inv_count=inv_count,
                                       eps=_EPS, epilogue=elementwise_fn)
            out = pl.pallas_call(
                kernel,
                out_shape=jax.ShapeDtypeStruct((N, Cp, Sp, _LANE), x_nchw.dtype),
                grid_spec=pltpu.PrefetchScalarGridSpec(
                    num_scalar_prefetch=0,
                    grid=(N // TB,),
                    in_specs=[
                        pl.BlockSpec((TB, Cp, Sp, _LANE),
                                     lambda n: (n, 0, 0, 0)),
                        pl.BlockSpec((Cp, _LANE), lambda n: (0, 0)),
                        pl.BlockSpec((Cp, _LANE), lambda n: (0, 0)),
                    ],
                    out_specs=pl.BlockSpec((TB, Cp, Sp, _LANE),
                                           lambda n: (n, 0, 0, 0)),
                ),
                compiler_params=pltpu.CompilerParams(
                    dimension_semantics=("parallel",),
                    vmem_limit_bytes=vmem_limit,
                ),
            )(x4, gamma2d, beta2d)
            return out.reshape(N, C, H, W)
        # else: fall through to the tiled path / reference.

    # ---------------- tiled path: grid over (batch, channel) --------------
    if allow_tiled:
        TB = _choose_batch_tile(N, Sp * _LANE * itemsize, max_block_bytes,
                                tb_cap=8)
        per_row_bytes = TB * Sp * _LANE * itemsize        # TB samples, 1 channel
        tc_cap = max(1, max_block_bytes // max(per_row_bytes, 1))
        tc_divs = [d for d in range(1, min(Cp, tc_cap) + 1) if Cp % d == 0]
        TC = max(tc_divs) if tc_divs else 1
        block_bytes = TB * TC * Sp * _LANE * itemsize
        block_f32 = TB * TC * Sp * _LANE * 4
        Nb, Cb = N // TB, Cp // TC

        vmem_limit, fits = _vmem_limit_bytes(
            buffered_blocks=[block_bytes, block_bytes,
                             8 * 2 * _LANE * 4, 2 * 8 * _LANE * 4],
            temporaries=[2 * block_f32],
            resident=affine_bytes)
        if fits:
            # Pass 1: per-sample sum / sum-of-squares across channel tiles.
            # TODO(synk): Welford/Chan-style combine across channel tiles would
            # be safer than E[x^2]-mean^2 for extreme |mean|/std ratios.
            stats = pl.pallas_call(
                functools.partial(_gn_stats_kernel, tb=TB),
                out_shape=jax.ShapeDtypeStruct((Nb * 8, 2 * _LANE), jnp.float32),
                grid_spec=pltpu.PrefetchScalarGridSpec(
                    num_scalar_prefetch=0,
                    grid=(Nb, Cb),
                    in_specs=[pl.BlockSpec((TB, TC, Sp, _LANE),
                                           lambda n, c: (n, c, 0, 0))],
                    out_specs=pl.BlockSpec((8, 2 * _LANE), lambda n, c: (n, 0)),
                ),
                compiler_params=pltpu.CompilerParams(
                    dimension_semantics=("parallel", "arbitrary"),
                    vmem_limit_bytes=vmem_limit,
                ),
            )(x4)

            stats = stats.reshape(Nb, 8, 2, _LANE)[:, :TB]     # (Nb, TB, 2, 128)
            s = jnp.sum(stats[:, :, 0, :], axis=-1).reshape(N)
            ss = jnp.sum(stats[:, :, 1, :], axis=-1).reshape(N)
            mean = s * inv_count
            var = jnp.maximum(ss * inv_count - mean * mean, 0.0)
            rstd = lax.rsqrt(var + _EPS)

            def _per_sample_rows(v):                  # (N,) -> (Nb*8, 128) f32
                blk = jnp.zeros((Nb, 8), jnp.float32).at[:, :TB].set(
                    v.reshape(Nb, TB))
                return jnp.broadcast_to(blk.reshape(Nb * 8, 1), (Nb * 8, _LANE))

            mean_rows = _per_sample_rows(mean)
            rstd_rows = _per_sample_rows(rstd)

            out = pl.pallas_call(
                functools.partial(_gn_norm_kernel, tb=TB, tc=TC,
                                  epilogue=elementwise_fn),
                out_shape=jax.ShapeDtypeStruct((N, Cp, Sp, _LANE), x_nchw.dtype),
                grid_spec=pltpu.PrefetchScalarGridSpec(
                    num_scalar_prefetch=0,
                    grid=(Nb, Cb),
                    in_specs=[
                        pl.BlockSpec((TB, TC, Sp, _LANE),
                                     lambda n, c: (n, c, 0, 0)),
                        pl.BlockSpec((Cp, _LANE), lambda n, c: (0, 0)),
                        pl.BlockSpec((Cp, _LANE), lambda n, c: (0, 0)),
                        pl.BlockSpec((8, _LANE), lambda n, c: (n, 0)),
                        pl.BlockSpec((8, _LANE), lambda n, c: (n, 0)),
                    ],
                    out_specs=pl.BlockSpec((TB, TC, Sp, _LANE),
                                           lambda n, c: (n, c, 0, 0)),
                ),
                compiler_params=pltpu.CompilerParams(
                    dimension_semantics=("parallel", "parallel"),
                    vmem_limit_bytes=vmem_limit,
                ),
            )(x4, gamma2d, beta2d, mean_rows, rstd_rows)
            return out.reshape(N, C, H, W)

    # ------------------ fallback: plain-JAX reference ---------------------
    # TODO(synk): manual-DMA path for shapes too large for any BlockSpec tiling.
    y = _groupnorm1_ref(x_nchw, gamma, beta)
    return elementwise_fn(y) if elementwise_fn is not None else y


class PreNorm:
    """JAX/Pallas equivalent of the PyTorch PreNorm module.

    `fn` is the arbitrary wrapped module applied after the GroupNorm.  With
    `fuse_fn=True`, `fn` must be PURELY elementwise (e.g. an activation) and
    is fused into the kernel epilogue; any fn with cross-element dependence
    (attention, pooling, softmax) must use the default `fuse_fn=False`.
    """

    def __init__(self, dim, fn, gamma=None, beta=None, fuse_fn=False):
        self.fn = fn
        self.fuse_fn = fuse_fn
        # nn.GroupNorm default init: weight=1, bias=0 (deterministic).
        self.gamma = jnp.ones((dim,), jnp.float32) if gamma is None else gamma
        self.beta = jnp.zeros((dim,), jnp.float32) if beta is None else beta

    def __call__(self, x):
        if self.fuse_fn and self.fn is not None:
            return groupnorm1_pallas(x, self.gamma, self.beta,
                                     elementwise_fn=self.fn)
        x = groupnorm1_pallas(x, self.gamma, self.beta)
        return self.fn(x) if self.fn is not None else x


if __name__ == "__main__":
    key = jax.random.PRNGKey(0)
    kx, kg, kb, kx2, kx3, kg3, kb3 = jax.random.split(key, 7)

    # Test 1: demo shape (batch=2), fast path, fn applied after the kernel
    # (as the original module does for an arbitrary wrapped fn).
    N, C, H, W = 2, 4, 16, 16
    x = jax.random.normal(kx, (N, C, H, W), jnp.float32)
    gamma = 1.0 + 0.1 * jax.random.normal(kg, (C,), jnp.float32)
    beta = 0.1 * jax.random.normal(kb, (C,), jnp.float32)

    model = PreNorm(C, fn=lambda t: t, gamma=gamma, beta=beta)
    out = jax.block_until_ready(model(x))
    ref = _groupnorm1_ref(x, gamma, beta)
    assert out.shape == (N, C, H, W)
    assert jnp.allclose(out, ref, atol=1e-4, rtol=1e-4)

    # Test 2: batch=4 exercises TB>1 / even-grid batch tiling and the fused
    # elementwise-fn epilogue on the fast path.
    N2 = 4
    x2 = jax.random.normal(kx2, (N2, C, H, W), jnp.float32)
    model2 = PreNorm(C, fn=jax.nn.silu, gamma=gamma, beta=beta, fuse_fn=True)
    out2 = jax.block_until_ready(model2(x2))
    ref2 = jax.nn.silu(_groupnorm1_ref(x2, gamma, beta))
    assert out2.shape == (N2, C, H, W)
    assert jnp.allclose(out2, ref2, atol=1e-4, rtol=1e-4)

    # Test 3: force a tiny block budget to exercise the channel-tiled
    # two-pass path (stats accumulation grid + normalize grid).
    N3, C3 = 2, 8
    x3 = jax.random.normal(kx3, (N3, C3, H, W), jnp.float32)
    gamma3 = 1.0 + 0.1 * jax.random.normal(kg3, (C3,), jnp.float32)
    beta3 = 0.1 * jax.random.normal(kb3, (C3,), jnp.float32)
    out3 = jax.block_until_ready(
        groupnorm1_pallas(x3, gamma3, beta3, max_block_bytes=4096))
    ref3 = _groupnorm1_ref(x3, gamma3, beta3)
    assert out3.shape == (N3, C3, H, W)
    assert jnp.allclose(out3, ref3, atol=1e-4, rtol=1e-4)

    print("KERNEL_OK")
</pallas_src>

<mosaic_0001>
module attributes {stable_mosaic.version = 11 : i64} {
  func.func @_gn_fast_kernel(%arg0: i32, %arg1: memref<1x4x2x128xf32, #tpu.memory_space<vmem>>, %arg2: memref<4x128xf32, #tpu.memory_space<vmem>>, %arg3: memref<4x128xf32, #tpu.memory_space<vmem>>, %arg4: memref<1x4x2x128xf32, #tpu.memory_space<vmem>>) attributes {dimension_semantics = [#tpu.dimension_semantics<parallel>], iteration_bounds = array<i64: 2>, scalar_prefetch = 0 : i64, scratch_operands = 0 : i64, tpu.core_type = #tpu.core_type<tc>, window_params = [{transform_indices = @transform_0, window_bounds = array<i64: 1, 4, 2, 128>}, {pipeline_mode = #tpu.pipeline_mode<synchronous>, transform_indices = @transform_1, window_bounds = array<i64: 4, 128>}, {pipeline_mode = #tpu.pipeline_mode<synchronous>, transform_indices = @transform_2, window_bounds = array<i64: 4, 128>}, {transform_indices = @transform_3, window_bounds = array<i64: 1, 4, 2, 128>}]} {
    %c0 = arith.constant 0 : index
    %c0_0 = arith.constant 0 : index
    %c0_1 = arith.constant 0 : index
    %c0_2 = arith.constant 0 : index
    %0 = vector.load %arg1[%c0, %c0_0, %c0_1, %c0_2] : memref<1x4x2x128xf32, #tpu.memory_space<vmem>>, vector<1x4x2x128xf32>
    %cst = arith.constant dense<0.000000e+00> : vector<1xf32>
    %1 = vector.multi_reduction <add>, %0, %cst [1, 2, 3] : vector<1x4x2x128xf32> to vector<1xf32>
    %2 = vector.shape_cast %1 : vector<1xf32> to vector<1x1x1x1xf32>
    %cst_3 = arith.constant 9.765625E-4 : f32
    %3 = vector.broadcast %cst_3 : f32 to vector<1x1x1x1xf32>
    %4 = arith.mulf %2, %3 : vector<1x1x1x1xf32>
    %c0_4 = arith.constant 0 : index
    %c0_5 = arith.constant 0 : index
    %c0_6 = arith.constant 0 : index
    %c0_7 = arith.constant 0 : index
    %5 = vector.load %arg1[%c0_4, %c0_5, %c0_6, %c0_7] : memref<1x4x2x128xf32, #tpu.memory_space<vmem>>, vector<1x4x2x128xf32>
    %6 = vector.broadcast %4 : vector<1x1x1x1xf32> to vector<1x4x2x128xf32>
    %7 = arith.subf %5, %6 : vector<1x4x2x128xf32>
    %8 = arith.mulf %7, %7 : vector<1x4x2x128xf32>
    %cst_8 = arith.constant dense<0.000000e+00> : vector<1xf32>
    %9 = vector.multi_reduction <add>, %8, %cst_8 [1, 2, 3] : vector<1x4x2x128xf32> to vector<1xf32>
    %10 = vector.shape_cast %9 : vector<1xf32> to vector<1x1x1x1xf32>
    %cst_9 = arith.constant 9.765625E-4 : f32
    %11 = vector.broadcast %cst_9 : f32 to vector<1x1x1x1xf32>
    %12 = arith.mulf %10, %11 : vector<1x1x1x1xf32>
    %cst_10 = arith.constant 9.99999974E-6 : f32
    %13 = vector.broadcast %cst_10 : f32 to vector<1x1x1x1xf32>
    %14 = arith.addf %12, %13 : vector<1x1x1x1xf32>
    %15 = math.rsqrt %14 : vector<1x1x1x1xf32>
    %c0_11 = arith.constant 0 : index
    %c0_12 = arith.constant 0 : index
    %c0_13 = arith.constant 0 : index
    %c0_14 = arith.constant 0 : index
    %16 = vector.load %arg1[%c0_11, %c0_12, %c0_13, %c0_14] : memref<1x4x2x128xf32, #tpu.memory_space<vmem>>, vector<1x4x2x128xf32>
    %17 = vector.broadcast %4 : vector<1x1x1x1xf32> to vector<1x4x2x128xf32>
    %18 = arith.subf %16, %17 : vector<1x4x2x128xf32>
    %19 = vector.broadcast %15 : vector<1x1x1x1xf32> to vector<1x4x2x128xf32>
    %20 = arith.mulf %18, %19 : vector<1x4x2x128xf32>
    %c0_15 = arith.constant 0 : index
    %c0_16 = arith.constant 0 : index
    %21 = vector.load %arg2[%c0_15, %c0_16] : memref<4x128xf32, #tpu.memory_space<vmem>>, vector<4x128xf32>
    %22 = vector.shape_cast %21 : vector<4x128xf32> to vector<1x4x1x128xf32>
    %23 = vector.broadcast %22 : vector<1x4x1x128xf32> to vector<1x4x2x128xf32>
    %24 = arith.mulf %20, %23 : vector<1x4x2x128xf32>
    %c0_17 = arith.constant 0 : index
    %c0_18 = arith.constant 0 : index
    %25 = vector.load %arg3[%c0_17, %c0_18] : memref<4x128xf32, #tpu.memory_space<vmem>>, vector<4x128xf32>
    %26 = vector.shape_cast %25 : vector<4x128xf32> to vector<1x4x1x128xf32>
    %27 = vector.broadcast %26 : vector<1x4x1x128xf32> to vector<1x4x2x128xf32>
    %28 = arith.addf %24, %27 : vector<1x4x2x128xf32>
    %c0_19 = arith.constant 0 : index
    %c0_20 = arith.constant 0 : index
    %c0_21 = arith.constant 0 : index
    %c0_22 = arith.constant 0 : index
    %29 = vector.load %arg4[%c0_19, %c0_20, %c0_21, %c0_22] : memref<1x4x2x128xf32, #tpu.memory_space<vmem>>, vector<1x4x2x128xf32>
    tpu.vector_store %arg4[%c0_19, %c0_20, %c0_21, %c0_22], %28 {strides = array<i32>} : memref<1x4x2x128xf32, #tpu.memory_space<vmem>>, vector<1x4x2x128xf32>,
    return
  }
  func.func @transform_0(%arg0: i32) -> (i32, i32, i32, i32) {
    %c0_i32 = arith.constant 0 : i32
    %c0_i32_0 = arith.constant 0 : i32
    %c0_i32_1 = arith.constant 0 : i32
    %c0_i32_2 = arith.constant 0 : i32
    return %arg0, %c0_i32, %c0_i32_0, %c0_i32_1 : i32, i32, i32, i32
  }
  func.func @transform_1(%arg0: i32) -> (i32, i32) {
    %c0_i32 = arith.constant 0 : i32
    %c0_i32_0 = arith.constant 0 : i32
    %c0_i32_1 = arith.constant 0 : i32
    return %c0_i32, %c0_i32_0 : i32, i32
  }
  func.func @transform_2(%arg0: i32) -> (i32, i32) {
    %c0_i32 = arith.constant 0 : i32
    %c0_i32_0 = arith.constant 0 : i32
    %c0_i32_1 = arith.constant 0 : i32
    return %c0_i32, %c0_i32_0 : i32, i32
  }
  func.func @transform_3(%arg0: i32) -> (i32, i32, i32, i32) {
    %c0_i32 = arith.constant 0 : i32
    %c0_i32_0 = arith.constant 0 : i32
    %c0_i32_1 = arith.constant 0 : i32
    %c0_i32_2 = arith.constant 0 : i32
    return %arg0, %c0_i32, %c0_i32_0, %c0_i32_1 : i32, i32, i32, i32
  }
}

</mosaic_0001>

<llo_original>
// kernel: tpu_custom_call.1
$region0: #{tpu_custom_call.1}
  #allocation0 [shape = 'u32[]', space=smem, size = 0x4, offset = 0x4, fixed_abs, tag = 'smem constant byte address 0x4 - core index']
  #allocation1 [shape = 'u32[144,128]{1,0:T(1,128)}', space=vmem, size = 0x12000, scoped, tag = 'internal scratch']
  %s0 = inlined_call_operand.hbm [shape: f32[2,4,2,128], index: 0, kind: input, shape index: {}]
  %s1 = inlined_call_operand.hbm [shape: f32[4,128], index: 1, kind: input, shape index: {}]
  %s2 = inlined_call_operand.hbm [shape: f32[4,128], index: 2, kind: input, shape index: {}]
  %s3 = inlined_call_operand.hbm [shape: f32[2,4,2,128], index: 3, kind: output, shape index: {}]
  %s4 = sld [smem:[#allocation0]]
  $region57: #{tpu_custom_call.1} parent=0
    _
  %s6 = ssub.s32 1, %s4
  %s7 = scalar_select 0, %s6, %s4
  $region1: #{tpu_custom_call.1} parent=0
    #allocation2 [shape = 'u8[8192]{0}', space=vmem, size = 0x2000, scoped, tag = 'input window, operand 0']
    #allocation3 [shape = 's32[2]{0}', space=sflag, size = 0x8, scoped, tag = 'scoped memory for tpu_custom_call.1']
    #allocation4 [shape = 's32[2]{0}', space=sflag, size = 0x8, scoped, tag = 'scoped memory for tpu_custom_call.1']
    #allocation5 [shape = 'u8[2048]{0}', space=vmem, size = 0x800, scoped, tag = 'input window, operand 1, single buffered']
    #allocation6 [shape = 's32[1]{0}', space=sflag, size = 0x4, scoped, tag = 'scoped memory for tpu_custom_call.1']
    #allocation7 [shape = 'u8[2048]{0}', space=vmem, size = 0x800, scoped, tag = 'input window, operand 2, single buffered']
    #allocation8 [shape = 'u8[8192]{0}', space=vmem, size = 0x2000, scoped, tag = 'output window, operand 0']
    %8 = vsyncpa [#allocation3], 0
    %s9 = scalar_lea.sflag [#allocation3], 1
    %10 = vsyncpa %s9, 0
    %11 = vsyncpa [#allocation6], 0
    %12 = vsyncpa [#allocation4], 0
    %s13 = scalar_lea.sflag [#allocation4], 1
    %14 = vsyncpa %s13, 0
    loop: start=0, step=1, limit=4
    $region2: #{tpu_custom_call.1} parent=1 // loop_pre_header
      _
    $region3: #{tpu_custom_call.1} parent=1 // loop_header
      %s16 = sphi 0, %s20
      %p17 = scmp.ge.s32.totalorder %s16, 4
      %s26 = sphi 0, %s28
      %s29 = sphi 0, %s26
      %s30 = sphi 0, %s29
      %s46 = sphi 0, %s30
      %s50 = sphi 0, %s50
      %s52 = sphi 0, %s50
      %s53 = sphi 0, %s52
      %s67 = sphi 0, %s53
      %s71 = sphi 0, %s71
      %s73 = sphi 0, %s71
      %s74 = sphi 0, %s73
      %s88 = sphi 0, %s74
      %s94 = sphi 0, %s96
      %s97 = sphi 0, %s94
      %s98 = sphi 0, %s97
      %s114 = sphi 0, %s98
    $region4: #{tpu_custom_call.1} parent=1 // loop_header_branch
      %19 = sbr.rel (%p17) target = $region8
    $region5: #{tpu_custom_call.1} parent=1 // loop_body
      %s21 = ssub.s32 %s16, 1
      %s22 = ssub.s32 %s16, 2
      %s23 = sadd.s32 %s16, 1
      %s24 = ssub.s32 %s16, %s23
      %p25 = scmp.eq.s32.totalorder %s24, 0
      %s27 = sadd.s32 %s26, 1
      %s28 = scalar_select %p25, %s26, %s27
      %p31 = pneg %p25
      %p32 = scmp.eq.s32.totalorder %s16, 1
      %p33 = por %p31, %p32
      %p34 = scmp.ne.s32.totalorder %s26, %s29
      %p35 = scmp.eq.s32.totalorder %s16, 0
      %p36 = por %p34, %p35
      %p37 = scmp.ne.s32.totalorder %s26, %s29
      %p38 = scmp.eq.s32.totalorder %s21, 1
      %p39 = por %p37, %p38
      %p40 = scmp.ne.s32.totalorder %s29, %s30
      %p41 = scmp.eq.s32.totalorder %s21, 0
      %p42 = por %p40, %p41
      %p43 = scmp.ne.s32.totalorder %s29, %s30
      %p44 = scmp.eq.s32.totalorder %s22, 1
      %p45 = por %p43, %p44
      %p47 = scmp.ne.s32.totalorder %s30, %s46
      %p48 = scmp.eq.s32.totalorder %s22, 0
      %p49 = por %p47, %p48
      %s51 = sadd.s32 %s50, 1
      %p54 = scmp.eq.s32.totalorder %s16, 1
      %p55 = scmp.ne.s32.totalorder %s50, %s52
      %p56 = scmp.eq.s32.totalorder %s16, 0
      %p57 = por %p55, %p56
      %p58 = scmp.ne.s32.totalorder %s50, %s52
      %p59 = scmp.eq.s32.totalorder %s21, 1
      %p60 = por %p58, %p59
      %p61 = scmp.ne.s32.totalorder %s52, %s53
      %p62 = scmp.eq.s32.totalorder %s21, 0
      %p63 = por %p61, %p62
      %p64 = scmp.ne.s32.totalorder %s52, %s53
      %p65 = scmp.eq.s32.totalorder %s22, 1
      %p66 = por %p64, %p65
      %p68 = scmp.ne.s32.totalorder %s53, %s67
      %p69 = scmp.eq.s32.totalorder %s22, 0
      %p70 = por %p68, %p69
      %s72 = sadd.s32 %s71, 1
      %p75 = scmp.eq.s32.totalorder %s16, 1
      %p76 = scmp.ne.s32.totalorder %s71, %s73
      %p77 = scmp.eq.s32.totalorder %s16, 0
      %p78 = por %p76, %p77
      %p79 = scmp.ne.s32.totalorder %s71, %s73
      %p80 = scmp.eq.s32.totalorder %s21, 1
      %p81 = por %p79, %p80
      %p82 = scmp.ne.s32.totalorder %s73, %s74
      %p83 = scmp.eq.s32.totalorder %s21, 0
      %p84 = por %p82, %p83
      %p85 = scmp.ne.s32.totalorder %s73, %s74
      %p86 = scmp.eq.s32.totalorder %s22, 1
      %p87 = por %p85, %p86
      %p89 = scmp.ne.s32.totalorder %s74, %s88
      %p90 = scmp.eq.s32.totalorder %s22, 0
      %p91 = por %p89, %p90
      %s92 = ssub.s32 %s16, %s23
      %p93 = scmp.eq.s32.totalorder %s92, 0
      %s95 = sadd.s32 %s94, 1
      %s96 = scalar_select %p93, %s94, %s95
      %p99 = pneg %p93
      %p100 = scmp.eq.s32.totalorder %s16, 1
      %p101 = por %p99, %p100
      %p102 = scmp.ne.s32.totalorder %s94, %s97
      %p103 = scmp.eq.s32.totalorder %s16, 0
      %p104 = por %p102, %p103
      %p105 = scmp.ne.s32.totalorder %s94, %s97
      %p106 = scmp.eq.s32.totalorder %s21, 1
      %p107 = por %p105, %p106
      %p108 = scmp.ne.s32.totalorder %s97, %s98
      %p109 = scmp.eq.s32.totalorder %s21, 0
      %p110 = por %p108, %p109
      %p111 = scmp.ne.s32.totalorder %s97, %s98
      %p112 = scmp.eq.s32.totalorder %s22, 1
      %p113 = por %p111, %p112
      %p115 = scmp.ne.s32.totalorder %s98, %s114
      %p116 = scmp.eq.s32.totalorder %s22, 0
      %p117 = por %p115, %p116
      %p118 = scmp.le.s32.totalorder 1, %s16
      %p119 = scmp.lt.s32.totalorder %s16, 3
      %p120 = pnand %p118, %p119
      %p121 = pneg %p120
      // Predicated region
      $region9: #{tpu_custom_call.1} parent=5 // pred_check
        _
      $region10: #{tpu_custom_call.1} parent=5 // pred_check_branch
        %123 = sbr.rel (%p120) target = $region12
      $region11: #{tpu_custom_call.1} parent=5 // pred_region
        %s124 = ssub.s32 %s16, 1
        // Predicated region
        $region13: #{tpu_custom_call.1} parent=11 // pred_check
          %p125 = pneg %p63
        $region14: #{tpu_custom_call.1} parent=11 // pred_check_branch
          %127 = sbr.rel (%p125) target = $region16
        $region15: #{tpu_custom_call.1} parent=11 // pred_region
          %s129 = ssub.s32 64, 64
          %130 = vsyncadd [#allocation6], %s129
          %s132 = sshll.u32 [#allocation5], 4
          %s133 = int_to_ptr.vmem [resolvable:$true] %s132
          %135 = dma.hbm_to_vmem [thread:$0]  %s1, 64, %s133, [#allocation6]
        $region16: #{tpu_custom_call.1} parent=11 // pred_fallthru
          _
        // Predicated region
        $region17: #{tpu_custom_call.1} parent=11 // pred_check
          %p136 = pneg %p84
        $region18: #{tpu_custom_call.1} parent=11 // pred_check_branch
          %138 = sbr.rel (%p136) target = $region20
        $region19: #{tpu_custom_call.1} parent=11 // pred_region
          %s140 = ssub.s32 64, 64
          %141 = vsyncadd [#allocation6], %s140
          %s143 = sshll.u32 [#allocation7], 4
          %s144 = int_to_ptr.vmem [resolvable:$true] %s143
          %146 = dma.hbm_to_vmem [thread:$0]  %s2, 64, %s144, [#allocation6]
        $region20: #{tpu_custom_call.1} parent=11 // pred_fallthru
          _
      $region12: #{tpu_custom_call.1} parent=5 // pred_fallthru
        _
      %p147 = scmp.lt.s32.totalorder %s16, 2
      // Predicated region
      $region21: #{tpu_custom_call.1} parent=5 // pred_check
        %p148 = pneg %p147
      $region22: #{tpu_custom_call.1} parent=5 // pred_check_branch
        %150 = sbr.rel (%p148) target = $region24
      $region23: #{tpu_custom_call.1} parent=5 // pred_region
        // Predicated region
        $region25: #{tpu_custom_call.1} parent=23 // pred_check
          %p151 = pneg %p36
        $region26: #{tpu_custom_call.1} parent=23 // pred_check_branch
          %153 = sbr.rel (%p151) target = $region28
        $region27: #{tpu_custom_call.1} parent=23 // pred_region
          %s154 = sand.u32 %s26, 1
          %s155 = scalar_lea.sflag [#allocation3], %s154
          %s156 = sand.u32 %s26, 1
          %s157 = smul.addr %s156, 8
          %s158 = scalar_lea.vmem [#allocation2], %s157
          %s160 = ssub.s32 128, 128
          %161 = vsyncadd %s155, %s160
          %s162 = smul.addr %s16, 4
          %s163 = smul.addr %s162, 32
          %s164 = scalar_lea.hbm %s0, %s163
          %s165 = sshll.u32 %s158, 4
          %s166 = int_to_ptr.vmem [resolvable:$true] %s165
          %171 = dma.hbm_to_vmem [thread:$0]  %s164, 128, %s166, %s155, 32, 32, 2
        $region28: #{tpu_custom_call.1} parent=23 // pred_fallthru
          _
      $region24: #{tpu_custom_call.1} parent=5 // pred_fallthru
        _
      %p172 = scmp.le.s32.totalorder 1, %s16
      %p173 = scmp.lt.s32.totalorder %s16, 3
      %p174 = pnand %p172, %p173
      %p175 = pneg %p174
      // Predicated region
      $region29: #{tpu_custom_call.1} parent=5 // pred_check
        _
      $region30: #{tpu_custom_call.1} parent=5 // pred_check_branch
        %177 = sbr.rel (%p174) target = $region32
      $region31: #{tpu_custom_call.1} parent=5 // pred_region
        %s178 = ssub.s32 %s16, 1
        %s179 = sand.u32 %s29, 1
        %s180 = scalar_lea.sflag [#allocation3], %s179
        %s181 = sand.u32 %s29, 1
        %s182 = smul.addr %s181, 8
        %s183 = scalar_lea.vmem [#allocation2], %s182
        // Predicated region
        $region33: #{tpu_custom_call.1} parent=31 // pred_check
          %p184 = pneg %p42
        $region34: #{tpu_custom_call.1} parent=31 // pred_check_branch
          %186 = sbr.rel (%p184) target = $region36
        $region35: #{tpu_custom_call.1} parent=31 // pred_region
          %187 = dma.done %s180, 128
        $region36: #{tpu_custom_call.1} parent=31 // pred_fallthru
          _
        // Predicated region
        $region37: #{tpu_custom_call.1} parent=31 // pred_check
          %p188 = pneg %p63
        $region38: #{tpu_custom_call.1} parent=31 // pred_check_branch
          %190 = sbr.rel (%p188) target = $region40
        $region39: #{tpu_custom_call.1} parent=31 // pred_region
          %191 = dma.done [#allocation6], 64
        $region40: #{tpu_custom_call.1} parent=31 // pred_fallthru
          _
        // Predicated region
        $region41: #{tpu_custom_call.1} parent=31 // pred_check
          %p192 = pneg %p84
        $region42: #{tpu_custom_call.1} parent=31 // pred_check_branch
          %194 = sbr.rel (%p192) target = $region44
        $region43: #{tpu_custom_call.1} parent=31 // pred_region
          %195 = dma.done [#allocation6], 64
        $region44: #{tpu_custom_call.1} parent=31 // pred_fallthru
          _
        %s196 = sand.u32 %s29, 1
        %s197 = scalar_lea.sflag [#allocation3], %s196
        %s198 = sand.u32 %s29, 1
        %s199 = smul.addr %s198, 8
        %s200 = scalar_lea.vmem [#allocation2], %s199
        %p201 = pneg %p42
        %p202 = pneg %p39
        %p203 = pneg %p63
        %p204 = pneg %p60
        %p205 = pneg %p84
        %p206 = pneg %p81
        %p207 = pneg %p110
        %p208 = pneg %p107
        %s209 = sand.u32 %s97, 1
        %s210 = scalar_lea.sflag [#allocation4], %s209
        %s211 = sand.u32 %s97, 1
        %s212 = smul.addr %s211, 8
        %s213 = scalar_lea.vmem [#allocation8], %s212
        %v214 = vld [vmem:[%s183] sm:$0x3]
        %v215 = vld [vmem:[%s183 + $0x2] sm:$0x3]
        %v216 = vld [vmem:[%s183 + $0x4] sm:$0x3]
        %v217 = vld [vmem:[%s183 + $0x6] sm:$0x3]
        %vm218 = vcmask 1041408
        %v219 = vsel %vm218, %v214, 0.0
        %v220 = vsel %vm218, %v215, 0.0
        %v221 = vadd.f32 %v219, %v220
        %v222 = vsel %vm218, %v216, 0.0
        %v223 = vadd.f32 %v221, %v222
        %v224 = vsel %vm218, %v217, 0.0
        %v225 = vadd.f32 %v223, %v224
        %226 = vadd.xlane.f32.xlu0 %v225
        %v227 = vpop.xlane.xlu0 %226
        %v228 = vrot.slane %v227, 4
        %v229 = vadd.f32 %v227, %v228
        %v230 = vrot.slane %v229, 2
        %v231 = vadd.f32 %v229, %v230
        %v232 = vrot.slane %v231, 1
        %v233 = vadd.f32 %v231, %v232
        %v234 = vmul.f32 %v233, 0.0009765625
        %v235 = vsub.f32 %v214, %v234
        %v236 = vsub.f32 %v215, %v234
        %v237 = vsub.f32 %v216, %v234
        %v238 = vsub.f32 %v217, %v234
        %v239 = vmul.f32 %v235, %v235
        %v240 = vmul.f32 %v236, %v236
        %v241 = vmul.f32 %v237, %v237
        %v242 = vmul.f32 %v238, %v238
        %v243 = vsel %vm218, %v239, 0.0
        %v244 = vsel %vm218, %v240, 0.0
        %v245 = vadd.f32 %v243, %v244
        %v246 = vsel %vm218, %v241, 0.0
        %v247 = vadd.f32 %v245, %v246
        %v248 = vsel %vm218, %v242, 0.0
        %v249 = vadd.f32 %v247, %v248
        %250 = vadd.xlane.f32.xlu0 %v249
        %v251 = vpop.xlane.xlu0 %250
        %v252 = vrot.slane %v251, 4
        %v253 = vadd.f32 %v251, %v252
        %v254 = vrot.slane %v253, 2
        %v255 = vadd.f32 %v253, %v254
        %v256 = vrot.slane %v255, 1
        %v257 = vadd.f32 %v255, %v256
        %v258 = vmul.f32 %v257, 0.0009765625
        %v259 = vadd.f32 %v258, 1e-05
        %v260 = vrsqrt.pop %v259
        %v261 = vmul.f32 %v235, %v260
        %v262 = vmul.f32 %v236, %v260
        %v263 = vmul.f32 %v237, %v260
        %v264 = vmul.f32 %v238, %v260
        %v265 = vld [vmem:[#allocation5] sm:$0xf]
        %v268 = vunpack.c.l.s4 1966171168
        %v269 = vunpack.c.0.s8 %v268
        %v270 = vlaneseq
        %v271 = vshrl.u32 %v270, 7
        %v272 = vsub.s32 %v269, %v271
        %v273 = vrot.slane %v265, %v272
        %v274 = vcombine.high %v273, %v273
        %v276 = vunpack.c.l.s4 1966171168
        %v277 = vunpack.c.0.s8 %v276
        %v278 = vlaneseq
        %v279 = vshrl.u32 %v278, 7
        %v280 = vsub.s32 %v277, %v279
        %v281 = vrot.slane %v273, %v280
        %v283 = vunpack.c.l.s4 1966171168
        %v284 = vunpack.c.0.s8 %v283
        %v285 = vlaneseq
        %v286 = vshrl.u32 %v285, 7
        %v287 = vsub.s32 %v284, %v286
        %v288 = vrot.slane %v274, %v287
        %v289 = vcombine.high %v281, %v281
        %v290 = vcombine.high %v288, %v288
        %v291 = vlaneseq
        %v292 = vshrl.u32 %v291, 7
        %v293 = vsub.s32 0, %v292
        %v294 = vrot.slane %v281, %v293
        %v295 = vlaneseq
        %v296 = vshrl.u32 %v295, 7
        %v297 = vsub.s32 0, %v296
        %v298 = vrot.slane %v288, %v297
        %v299 = vlaneseq
        %v300 = vshrl.u32 %v299, 7
        %v301 = vsub.s32 0, %v300
        %v302 = vrot.slane %v289, %v301
        %v303 = vlaneseq
        %v304 = vshrl.u32 %v303, 7
        %v305 = vsub.s32 0, %v304
        %v306 = vrot.slane %v290, %v305
        %v311 = vmul.f32 %v261, %v294
        %v312 = vmul.f32 %v262, %v298
        %v313 = vmul.f32 %v263, %v302
        %v314 = vmul.f32 %v264, %v306
        %v315 = vld [vmem:[#allocation7] sm:$0xf]
        %v318 = vunpack.c.l.s4 1966171168
        %v319 = vunpack.c.0.s8 %v318
        %v320 = vlaneseq
        %v321 = vshrl.u32 %v320, 7
        %v322 = vsub.s32 %v319, %v321
        %v323 = vrot.slane %v315, %v322
        %v324 = vcombine.high %v323, %v323
        %v326 = vunpack.c.l.s4 1966171168
        %v327 = vunpack.c.0.s8 %v326
        %v328 = vlaneseq
        %v329 = vshrl.u32 %v328, 7
        %v330 = vsub.s32 %v327, %v329
        %v331 = vrot.slane %v323, %v330
        %v333 = vunpack.c.l.s4 1966171168
        %v334 = vunpack.c.0.s8 %v333
        %v335 = vlaneseq
        %v336 = vshrl.u32 %v335, 7
        %v337 = vsub.s32 %v334, %v336
        %v338 = vrot.slane %v324, %v337
        %v339 = vcombine.high %v331, %v331
        %v340 = vcombine.high %v338, %v338
        %v341 = vlaneseq
        %v342 = vshrl.u32 %v341, 7
        %v343 = vsub.s32 0, %v342
        %v344 = vrot.slane %v331, %v343
        %v345 = vlaneseq
        %v346 = vshrl.u32 %v345, 7
        %v347 = vsub.s32 0, %v346
        %v348 = vrot.slane %v338, %v347
        %v349 = vlaneseq
        %v350 = vshrl.u32 %v349, 7
        %v351 = vsub.s32 0, %v350
        %v352 = vrot.slane %v339, %v351
        %v353 = vlaneseq
        %v354 = vshrl.u32 %v353, 7
        %v355 = vsub.s32 0, %v354
        %v356 = vrot.slane %v340, %v355
        %v361 = vadd.f32 %v311, %v344
        %v362 = vadd.f32 %v312, %v348
        %v363 = vadd.f32 %v313, %v352
        %v364 = vadd.f32 %v314, %v356
        %365 = vst [vmem:[%s213] sm:$0x3] %v361
        %366 = vst [vmem:[%s213 + $0x2] sm:$0x3] %v362
        %367 = vst [vmem:[%s213 + $0x4] sm:$0x3] %v363
        %368 = vst [vmem:[%s213 + $0x6] sm:$0x3] %v364
        %s369 = sand.u32 %s97, 1
        %s370 = scalar_lea.sflag [#allocation4], %s369
        %s371 = sand.u32 %s97, 1
        %s372 = smul.addr %s371, 8
        %s373 = scalar_lea.vmem [#allocation8], %s372
        // Predicated region
        $region45: #{tpu_custom_call.1} parent=31 // pred_check
          %p374 = pneg %p107
        $region46: #{tpu_custom_call.1} parent=31 // pred_check_branch
          %376 = sbr.rel (%p374) target = $region48
        $region47: #{tpu_custom_call.1} parent=31 // pred_region
          %s378 = ssub.s32 128, 128
          %379 = vsyncadd %s370, %s378
          %s380 = smul.addr %s21, 4
          %s381 = smul.addr %s380, 32
          %s382 = scalar_lea.hbm %s3, %s381
          %s383 = sshll.u32 %s373, 4
          %s384 = int_to_ptr.vmem [resolvable:$true] %s383
          %389 = dma.vmem_to_hbm [thread:$0]  %s384, 128, %s382, %s370, 32, 32, 2
        $region48: #{tpu_custom_call.1} parent=31 // pred_fallthru
          _
      $region32: #{tpu_custom_call.1} parent=5 // pred_fallthru
        _
      %p390 = scmp.le.s32.totalorder 2, %s16
      // Predicated region
      $region49: #{tpu_custom_call.1} parent=5 // pred_check
        %p391 = pneg %p390
      $region50: #{tpu_custom_call.1} parent=5 // pred_check_branch
        %393 = sbr.rel (%p391) target = $region52
      $region51: #{tpu_custom_call.1} parent=5 // pred_region
        %s394 = ssub.s32 %s16, 2
        // Predicated region
        $region53: #{tpu_custom_call.1} parent=51 // pred_check
          %p395 = pneg %p113
        $region54: #{tpu_custom_call.1} parent=51 // pred_check_branch
          %397 = sbr.rel (%p395) target = $region56
        $region55: #{tpu_custom_call.1} parent=51 // pred_region
          %s398 = sand.u32 %s98, 1
          %s399 = scalar_lea.sflag [#allocation4], %s398
          %s400 = sand.u32 %s98, 1
          %s401 = smul.addr %s400, 8
          %s402 = scalar_lea.vmem [#allocation8], %s401
          %403 = dma.done %s399, 128
        $region56: #{tpu_custom_call.1} parent=51 // pred_fallthru
          _
      $region52: #{tpu_custom_call.1} parent=5 // pred_fallthru
        _
    $region6: #{tpu_custom_call.1} parent=1 // loop_footer
      %s20 = sadd.s32 1, %s16
    $region7: #{tpu_custom_call.1} parent=1 // loop_footer_branch
      %15 = sbr.rel target = $region3
    $region8: #{tpu_custom_call.1} parent=1 // loop_exit
      _
    %404 = vsyncpa [#allocation3], 1
    %s405 = scalar_lea.sflag [#allocation3], 1
    %406 = vsyncpa %s405, 1
    %407 = vsyncpa [#allocation6], 1
    %408 = vsyncpa [#allocation4], 1
    %s409 = scalar_lea.sflag [#allocation4], 1
    %410 = vsyncpa %s409, 1

</llo_original>
